<compile_context>
chip_gen: v7x
topology: tpu7x:2x2x1
jax: 0.10.0
libtpu: 0.0.40
codegen_flags: <defaults>
</compile_context>

<pallas_src>
import jax
import jax.numpy as jnp
import numpy as np
from jax import lax
from jax.experimental import pallas as pl
from jax.experimental.pallas import tpu as pltpu


def _make_kernel(use_bf16_mxu: bool, tiled: bool):
    def compute(x, w, x_res, out_dtype):
        if use_bf16_mxu:
            lhs = x.astype(jnp.bfloat16)
            rhs = w.astype(jnp.bfloat16)
        else:
            lhs, rhs = x, w
        # y[m, o] = sum_k x[m, k] * W[o, k]   (== x @ W^T, no wrapper transpose)
        y = lax.dot_general(
            lhs,
            rhs,
            dimension_numbers=(((1,), (1,)), ((), ())),
            preferred_element_type=jnp.float32,
        )
        return (y + x_res.astype(jnp.float32)).astype(out_dtype)

    if tiled:
        # x_ref: (tm, dim) rows, x_res_ref: (tm, tn) residual slice,
        # w_ref: (tn, dim) out_features slice of W, o_ref: (tm, tn).
        def kernel(x_ref, x_res_ref, w_ref, o_ref):
            o_ref[...] = compute(x_ref[...], w_ref[...], x_res_ref[...], o_ref.dtype)
    else:
        # x_ref: (tm, dim), w_ref: (dim, dim) full resident weight, o_ref: (tm, dim).
        def kernel(x_ref, w_ref, o_ref):
            x = x_ref[...]
            o_ref[...] = compute(x, w_ref[...], x, o_ref.dtype)

    return kernel


def _round_up(v, mult):
    return ((v + mult - 1) // mult) * mult


def _choose_col_tile(dim, w_itemsize):
    """Out-feature tile: whole weight resident when small, lane-aligned
    slices otherwise (keeps the weight footprint <= 16 MiB of VMEM)."""
    if dim * dim * w_itemsize <= (16 << 20) or dim % 128 != 0:
        return dim
    for cand in (1024, 512, 256, 128):
        if dim % cand == 0 and 2 * cand * dim * w_itemsize <= (16 << 20):
            return cand
    return 128


def _choose_row_tile(m, dim, tn, grid_n, x_itemsize, w_itemsize):
    """Pick a large row tile that fits a conservative VMEM budget (safe even
    on v7x's 64 MiB physical VMEM) while keeping >= 2 total grid steps when
    possible (software pipelining + megacore balance)."""
    sublane = {4: 8, 2: 16, 1: 32}.get(x_itemsize, 8)
    budget = 40 << 20
    tiled = tn != dim
    w_buf = (2 * tn * dim * w_itemsize) if tiled else (dim * dim * w_itemsize)
    per_row = 2 * dim * x_itemsize + 2 * tn * x_itemsize  # x + out, double-buffered
    if tiled:
        per_row += 2 * tn * x_itemsize  # residual slice, double-buffered
    avail = max(budget - w_buf, 4 * sublane * per_row)
    tm = max(sublane, min(512, int(avail // per_row)))
    tm = min(tm, _round_up(m, sublane))  # never pad far past the real row count
    tm = max(sublane, (tm // sublane) * sublane)
    # Avoid a degenerate 1-step grid (idles one v7x TensorCore and defeats the
    # input/output pipeline) unless m itself is tiny.
    while tm > sublane and pl.cdiv(m, tm) * grid_n < 2:
        tm = max(sublane, (tm // 2 // sublane) * sublane)
    return tm


def full_rank_adversary(x, weight, *, tm=None, tn=None, use_bf16_mxu=False):
    """Forward of FullRankAdversary: Linear(dim, dim, bias=False)(x) + x.

    x:      (..., dim)
    weight: (dim, dim)  PyTorch Linear layout (out_features, in_features)
    """
    orig_shape = x.shape
    dim = orig_shape[-1]
    assert weight.shape == (dim, dim), "weight must be (dim, dim)"

    x2d = x.reshape(-1, dim)
    m = x2d.shape[0]
    x_item = x2d.dtype.itemsize
    w_item = weight.dtype.itemsize

    if tn is None:
        tn = _choose_col_tile(dim, w_item)
    assert tn == dim or (dim % tn == 0 and tn % 128 == 0), "bad out-feature tile"
    grid_n = dim // tn
    tiled = grid_n > 1

    if tm is None:
        tm = _choose_row_tile(m, dim, tn, grid_n, x_item, w_item)

    # Pad rows to a multiple of the tile instead of asserting divisibility.
    grid_m = pl.cdiv(m, tm)
    m_pad = grid_m * tm
    if m_pad != m:
        x2d = jnp.pad(x2d, ((0, m_pad - m), (0, 0)))

    # VMEM footprint -> limit (leave headroom, stay under v7x 64 MiB physical).
    w_buf = (2 * tn * dim * w_item) if tiled else (dim * dim * w_item)
    io_buf = 2 * tm * dim * x_item + 2 * tm * tn * x_item
    if tiled:
        io_buf += 2 * tm * tn * x_item
    vmem_limit = int(min(max(w_buf + io_buf + (4 << 20), 32 << 20), 56 << 20))

    weight_reads = grid_m if tiled else 1
    cost = pl.CostEstimate(
        flops=2 * m_pad * dim * dim + m_pad * dim,
        transcendentals=0,
        bytes_accessed=(m_pad * dim * x_item) * (3 if tiled else 2)
        + weight_reads * dim * dim * w_item,
    )

    x_spec = pl.BlockSpec((tm, dim), lambda i, j: (i, 0))
    out_spec = pl.BlockSpec((tm, tn), lambda i, j: (i, j))
    if tiled:
        # Weight sliced along out_features; residual gets its own (tm, tn) tile.
        w_spec = pl.BlockSpec((tn, dim), lambda i, j: (j, 0))
        x_res_spec = pl.BlockSpec((tm, tn), lambda i, j: (i, j))
        in_specs = [x_spec, x_res_spec, w_spec]
        operands = (x2d, x2d, weight)
    else:
        # Constant-index weight block: single-buffer it (resident once in
        # VMEM, no pointless double-buffer); freed VMEM goes to a larger tm.
        w_spec = pl.BlockSpec(
            (dim, dim), lambda i, j: (0, 0), pipeline_mode=pl.Buffered(1)
        )
        in_specs = [x_spec, w_spec]
        operands = (x2d, weight)

    out = pl.pallas_call(
        _make_kernel(use_bf16_mxu, tiled),
        out_shape=jax.ShapeDtypeStruct((m_pad, dim), x.dtype),
        grid_spec=pltpu.PrefetchScalarGridSpec(
            num_scalar_prefetch=0,
            grid=(grid_m, grid_n),
            in_specs=in_specs,
            out_specs=out_spec,
        ),
        compiler_params=pltpu.CompilerParams(
            dimension_semantics=("parallel", "parallel"),
            vmem_limit_bytes=vmem_limit,
        ),
        cost_estimate=cost,
    )(*operands)

    if m_pad != m:
        out = out[:m]
    return out.reshape(orig_shape)


if __name__ == "__main__":
    batch, seq, dim = 2, 9, 128  # seq=9 -> 18 rows, exercises row padding

    key = jax.random.PRNGKey(0)
    kx, kw, kx2, kw2 = jax.random.split(key, 4)
    x = jax.random.normal(kx, (batch, seq, dim), dtype=jnp.float32)

    # 1) Random weight: exercises the MXU path / transpose direction.
    weight = 0.02 * jax.random.normal(kw, (dim, dim), dtype=jnp.float32)
    out = jax.block_until_ready(full_rank_adversary(x, weight))
    assert out.shape == x.shape

    x64 = np.asarray(x, dtype=np.float64)
    w64 = np.asarray(weight, dtype=np.float64)
    ref = x64 @ w64.T + x64  # PyTorch Linear: contract on in_features
    assert np.allclose(np.asarray(out, np.float64), ref, atol=5e-2), (
        "mismatch vs reference (random weight)"
    )

    # 2) Zero weight (the module's init): output must equal the input.
    w_zero = jnp.zeros((dim, dim), dtype=jnp.float32)
    out_zero = jax.block_until_ready(full_rank_adversary(x, w_zero))
    assert jnp.allclose(out_zero, x, atol=1e-6), "mismatch for zero weight"

    # 3) bf16-MXU fast path (v6e/v7x oriented): looser tolerance.
    out_bf16 = jax.block_until_ready(
        full_rank_adversary(x, weight, use_bf16_mxu=True)
    )
    assert np.allclose(np.asarray(out_bf16, np.float64), ref, atol=1e-1), (
        "mismatch vs reference (bf16 MXU path)"
    )

    # 4) Out-feature-tiled weight path (what large-dim weights use), forced at
    #    a small shape: dim=256 with tn=128 -> grid_n=2, residual-slice path.
    dim2 = 256
    x_b = jax.random.normal(kx2, (batch, seq, dim2), dtype=jnp.float32)
    w_b = 0.02 * jax.random.normal(kw2, (dim2, dim2), dtype=jnp.float32)
    out_b = jax.block_until_ready(full_rank_adversary(x_b, w_b, tn=128))
    ref_b = (
        np.asarray(x_b, np.float64) @ np.asarray(w_b, np.float64).T
        + np.asarray(x_b, np.float64)
    )
    assert np.allclose(np.asarray(out_b, np.float64), ref_b, atol=5e-2), (
        "mismatch vs reference (tiled-weight path)"
    )

    print("KERNEL_OK")
</pallas_src>

<mosaic_0001>
module attributes {stable_mosaic.version = 11 : i64} {
  func.func @kernel(%arg0: i32, %arg1: i32, %arg2: memref<8x128xf32, #tpu.memory_space<vmem>>, %arg3: memref<128x128xf32, #tpu.memory_space<vmem>>, %arg4: memref<8x128xf32, #tpu.memory_space<vmem>>) attributes {dimension_semantics = [#tpu.dimension_semantics<parallel>, #tpu.dimension_semantics<parallel>], iteration_bounds = array<i64: 3, 1>, scalar_prefetch = 0 : i64, scratch_operands = 0 : i64, tpu.core_type = #tpu.core_type<tc>, window_params = [{transform_indices = @transform_0, window_bounds = array<i64: 8, 128>}, {pipeline_mode = #tpu.pipeline_mode<synchronous>, transform_indices = @transform_1, window_bounds = array<i64: 128, 128>}, {transform_indices = @transform_2, window_bounds = array<i64: 8, 128>}]} {
    %c0 = arith.constant 0 : index
    %c0_0 = arith.constant 0 : index
    %0 = vector.load %arg2[%c0, %c0_0] : memref<8x128xf32, #tpu.memory_space<vmem>>, vector<8x128xf32>
    %c0_1 = arith.constant 0 : index
    %c0_2 = arith.constant 0 : index
    %1 = vector.load %arg3[%c0_1, %c0_2] : memref<128x128xf32, #tpu.memory_space<vmem>>, vector<128x128xf32>
    %cst = arith.constant dense<0.000000e+00> : vector<8x128xf32>
    %2 = tpu.matmul %0, %1, %cst {dimension_numbers = #tpu.dot_dimension_numbers<[1], [1], [0], [0], [0, 0, 1, 0], [], []>} : vector<8x128xf32>, vector<128x128xf32>, vector<8x128xf32> -> vector<8x128xf32>
    %3 = arith.addf %2, %0 : vector<8x128xf32>
    %c0_3 = arith.constant 0 : index
    %c0_4 = arith.constant 0 : index
    %4 = vector.load %arg4[%c0_3, %c0_4] : memref<8x128xf32, #tpu.memory_space<vmem>>, vector<8x128xf32>
    tpu.vector_store %arg4[%c0_3, %c0_4], %3 {strides = array<i32>} : memref<8x128xf32, #tpu.memory_space<vmem>>, vector<8x128xf32>,
    return
  }
  func.func @transform_0(%arg0: i32, %arg1: i32) -> (i32, i32) {
    %c0_i32 = arith.constant 0 : i32
    %c0_i32_0 = arith.constant 0 : i32
    return %arg0, %c0_i32 : i32, i32
  }
  func.func @transform_1(%arg0: i32, %arg1: i32) -> (i32, i32) {
    %c0_i32 = arith.constant 0 : i32
    %c0_i32_0 = arith.constant 0 : i32
    %c0_i32_1 = arith.constant 0 : i32
    return %c0_i32, %c0_i32_0 : i32, i32
  }
  func.func @transform_2(%arg0: i32, %arg1: i32) -> (i32, i32) {
    %c0_i32 = arith.constant 0 : i32
    return %arg0, %arg1 : i32, i32
  }
}

</mosaic_0001>

<llo_original>
// kernel: tpu_custom_call.1
$region0: #{tpu_custom_call.1}
  #allocation0 [shape = 'u32[]', space=smem, size = 0x4, offset = 0x4, fixed_abs, tag = 'smem constant byte address 0x4 - core index']
  #allocation1 [shape = 'u32[144,128]{1,0:T(1,128)}', space=vmem, size = 0x12000, scoped, tag = 'internal scratch']
  %s0 = inlined_call_operand.hbm [shape: f32[24,128], index: 0, kind: input, shape index: {}]
  %s1 = inlined_call_operand.hbm [shape: f32[128,128], index: 1, kind: input, shape index: {}]
  %s2 = inlined_call_operand.hbm [shape: f32[24,128], index: 2, kind: output, shape index: {}]
  %s3 = sld [smem:[#allocation0]]
  $region49: #{tpu_custom_call.1} parent=0
    _
  %s5 = ssub.s32 1, %s3
  %s6 = scalar_select 0, %s5, %s3
  $region1: #{tpu_custom_call.1} parent=0
    #allocation2 [shape = 'u8[8192]{0}', space=vmem, size = 0x2000, scoped, tag = 'input window, operand 0']
    #allocation3 [shape = 's32[2]{0}', space=sflag, size = 0x8, scoped, tag = 'scoped memory for tpu_custom_call.1']
    #allocation4 [shape = 's32[2]{0}', space=sflag, size = 0x8, scoped, tag = 'scoped memory for tpu_custom_call.1']
    #allocation5 [shape = 'u8[65536]{0}', space=vmem, size = 0x10000, scoped, tag = 'input window, operand 1, single buffered']
    #allocation6 [shape = 's32[1]{0}', space=sflag, size = 0x4, scoped, tag = 'scoped memory for tpu_custom_call.1']
    #allocation7 [shape = 'u8[8192]{0}', space=vmem, size = 0x2000, scoped, tag = 'output window, operand 0']
    %7 = vsyncpa [#allocation3], 0
    %s8 = scalar_lea.sflag [#allocation3], 1
    %9 = vsyncpa %s8, 0
    %10 = vsyncpa [#allocation6], 0
    %11 = vsyncpa [#allocation4], 0
    %s12 = scalar_lea.sflag [#allocation4], 1
    %13 = vsyncpa %s12, 0
    loop: start=0, step=1, limit=5
    $region2: #{tpu_custom_call.1} parent=1 // loop_pre_header
      _
    $region3: #{tpu_custom_call.1} parent=1 // loop_header
      %s15 = sphi 0, %s19
      %p16 = scmp.ge.s32.totalorder %s15, 5
      %s22 = sphi 0, %s34
      %s23 = sphi 0, %s30
      %s24 = sphi 0, %s22
      %s25 = sphi 0, %s23
      %s26 = sphi 0, %s24
      %s27 = sphi 0, %s25
      %s37 = sphi 0, %s39
      %s40 = sphi 0, %s37
      %s41 = sphi 0, %s40
      %s57 = sphi 0, %s41
      %s61 = sphi 0, %s61
      %s63 = sphi 0, %s61
      %s64 = sphi 0, %s63
      %s78 = sphi 0, %s64
      %s86 = sphi 0, %s88
      %s89 = sphi 0, %s86
      %s90 = sphi 0, %s89
      %s106 = sphi 0, %s90
    $region4: #{tpu_custom_call.1} parent=1 // loop_header_branch
      %18 = sbr.rel (%p16) target = $region8
    $region5: #{tpu_custom_call.1} parent=1 // loop_body
      %s20 = ssub.s32 %s15, 1
      %s21 = ssub.s32 %s15, 2
      %s28 = sadd.s32 1, %s23
      %p29 = scmp.ge.s32.totalorder %s28, 1
      %s30 = scalar_select %p29, 0, %s28
      %s31 = sadd.s32 1, %s22
      %s32 = scalar_select %p29, %s31, %s22
      %p33 = scmp.ge.s32.totalorder %s32, 3
      %s34 = scalar_select %p33, 0, %s32
      %s35 = ssub.s32 %s22, %s34
      %p36 = scmp.eq.s32.totalorder %s35, 0
      %s38 = sadd.s32 %s37, 1
      %s39 = scalar_select %p36, %s37, %s38
      %p42 = pneg %p36
      %p43 = scmp.eq.s32.totalorder %s15, 2
      %p44 = por %p42, %p43
      %p45 = scmp.ne.s32.totalorder %s37, %s40
      %p46 = scmp.eq.s32.totalorder %s15, 0
      %p47 = por %p45, %p46
      %p48 = scmp.ne.s32.totalorder %s37, %s40
      %p49 = scmp.eq.s32.totalorder %s20, 2
      %p50 = por %p48, %p49
      %p51 = scmp.ne.s32.totalorder %s40, %s41
      %p52 = scmp.eq.s32.totalorder %s20, 0
      %p53 = por %p51, %p52
      %p54 = scmp.ne.s32.totalorder %s40, %s41
      %p55 = scmp.eq.s32.totalorder %s21, 2
      %p56 = por %p54, %p55
      %p58 = scmp.ne.s32.totalorder %s41, %s57
      %p59 = scmp.eq.s32.totalorder %s21, 0
      %p60 = por %p58, %p59
      %s62 = sadd.s32 %s61, 1
      %p65 = scmp.eq.s32.totalorder %s15, 2
      %p66 = scmp.ne.s32.totalorder %s61, %s63
      %p67 = scmp.eq.s32.totalorder %s15, 0
      %p68 = por %p66, %p67
      %p69 = scmp.ne.s32.totalorder %s61, %s63
      %p70 = scmp.eq.s32.totalorder %s20, 2
      %p71 = por %p69, %p70
      %p72 = scmp.ne.s32.totalorder %s63, %s64
      %p73 = scmp.eq.s32.totalorder %s20, 0
      %p74 = por %p72, %p73
      %p75 = scmp.ne.s32.totalorder %s63, %s64
      %p76 = scmp.eq.s32.totalorder %s21, 2
      %p77 = por %p75, %p76
      %p79 = scmp.ne.s32.totalorder %s64, %s78
      %p80 = scmp.eq.s32.totalorder %s21, 0
      %p81 = por %p79, %p80
      %s82 = ssub.s32 %s22, %s34
      %s83 = ssub.s32 %s23, %s30
      %s84 = sor.u32 %s82, %s83
      %p85 = scmp.eq.s32.totalorder %s84, 0
      %s87 = sadd.s32 %s86, 1
      %s88 = scalar_select %p85, %s86, %s87
      %p91 = pneg %p85
      %p92 = scmp.eq.s32.totalorder %s15, 2
      %p93 = por %p91, %p92
      %p94 = scmp.ne.s32.totalorder %s86, %s89
      %p95 = scmp.eq.s32.totalorder %s15, 0
      %p96 = por %p94, %p95
      %p97 = scmp.ne.s32.totalorder %s86, %s89
      %p98 = scmp.eq.s32.totalorder %s20, 2
      %p99 = por %p97, %p98
      %p100 = scmp.ne.s32.totalorder %s89, %s90
      %p101 = scmp.eq.s32.totalorder %s20, 0
      %p102 = por %p100, %p101
      %p103 = scmp.ne.s32.totalorder %s89, %s90
      %p104 = scmp.eq.s32.totalorder %s21, 2
      %p105 = por %p103, %p104
      %p107 = scmp.ne.s32.totalorder %s90, %s106
      %p108 = scmp.eq.s32.totalorder %s21, 0
      %p109 = por %p107, %p108
      %p110 = scmp.le.s32.totalorder 1, %s15
      %p111 = scmp.lt.s32.totalorder %s15, 4
      %p112 = pnand %p110, %p111
      %p113 = pneg %p112
      // Predicated region
      $region9: #{tpu_custom_call.1} parent=5 // pred_check
        _
      $region10: #{tpu_custom_call.1} parent=5 // pred_check_branch
        %115 = sbr.rel (%p112) target = $region12
      $region11: #{tpu_custom_call.1} parent=5 // pred_region
        %s116 = ssub.s32 %s15, 1
        // Predicated region
        $region13: #{tpu_custom_call.1} parent=11 // pred_check
          %p117 = pneg %p74
        $region14: #{tpu_custom_call.1} parent=11 // pred_check_branch
          %119 = sbr.rel (%p117) target = $region16
        $region15: #{tpu_custom_call.1} parent=11 // pred_region
          %s121 = ssub.s32 2048, 2048
          %122 = vsyncadd [#allocation6], %s121
          %s123 = sshll.u32 [#allocation5], 4
          %s124 = int_to_ptr.vmem [resolvable:$true] %s123
          %129 = dma.hbm_to_vmem [thread:$0]  %s1, 2048, %s124, [#allocation6], 128, 128, 8
        $region16: #{tpu_custom_call.1} parent=11 // pred_fallthru
          _
      $region12: #{tpu_custom_call.1} parent=5 // pred_fallthru
        _
      %p130 = scmp.lt.s32.totalorder %s15, 3
      // Predicated region
      $region17: #{tpu_custom_call.1} parent=5 // pred_check
        %p131 = pneg %p130
      $region18: #{tpu_custom_call.1} parent=5 // pred_check_branch
        %133 = sbr.rel (%p131) target = $region20
      $region19: #{tpu_custom_call.1} parent=5 // pred_region
        // Predicated region
        $region21: #{tpu_custom_call.1} parent=19 // pred_check
          %p134 = pneg %p47
        $region22: #{tpu_custom_call.1} parent=19 // pred_check_branch
          %136 = sbr.rel (%p134) target = $region24
        $region23: #{tpu_custom_call.1} parent=19 // pred_region
          %s137 = sand.u32 %s37, 1
          %s138 = scalar_lea.sflag [#allocation3], %s137
          %s139 = sand.u32 %s37, 1
          %s140 = smul.addr %s139, 8
          %s141 = scalar_lea.vmem [#allocation2], %s140
          %s143 = ssub.s32 128, 128
          %144 = vsyncadd %s138, %s143
          %s145 = smul.addr %s22, 128
          %s146 = scalar_lea.hbm %s0, %s145
          %s148 = sshll.u32 %s141, 4
          %s149 = int_to_ptr.vmem [resolvable:$true] %s148
          %151 = dma.hbm_to_vmem [thread:$0]  %s146, 128, %s149, %s138
        $region24: #{tpu_custom_call.1} parent=19 // pred_fallthru
          _
      $region20: #{tpu_custom_call.1} parent=5 // pred_fallthru
        _
      %p152 = scmp.le.s32.totalorder 1, %s15
      %p153 = scmp.lt.s32.totalorder %s15, 4
      %p154 = pnand %p152, %p153
      %p155 = pneg %p154
      // Predicated region
      $region25: #{tpu_custom_call.1} parent=5 // pred_check
        _
      $region26: #{tpu_custom_call.1} parent=5 // pred_check_branch
        %157 = sbr.rel (%p154) target = $region28
      $region27: #{tpu_custom_call.1} parent=5 // pred_region
        %s158 = ssub.s32 %s15, 1
        %s159 = sand.u32 %s40, 1
        %s160 = scalar_lea.sflag [#allocation3], %s159
        %s161 = sand.u32 %s40, 1
        %s162 = smul.addr %s161, 8
        %s163 = scalar_lea.vmem [#allocation2], %s162
        // Predicated region
        $region29: #{tpu_custom_call.1} parent=27 // pred_check
          %p164 = pneg %p53
        $region30: #{tpu_custom_call.1} parent=27 // pred_check_branch
          %166 = sbr.rel (%p164) target = $region32
        $region31: #{tpu_custom_call.1} parent=27 // pred_region
          %167 = dma.done %s160, 128
        $region32: #{tpu_custom_call.1} parent=27 // pred_fallthru
          _
        // Predicated region
        $region33: #{tpu_custom_call.1} parent=27 // pred_check
          %p168 = pneg %p74
        $region34: #{tpu_custom_call.1} parent=27 // pred_check_branch
          %170 = sbr.rel (%p168) target = $region36
        $region35: #{tpu_custom_call.1} parent=27 // pred_region
          %171 = dma.done [#allocation6], 2048
        $region36: #{tpu_custom_call.1} parent=27 // pred_fallthru
          _
        %s172 = sand.u32 %s40, 1
        %s173 = scalar_lea.sflag [#allocation3], %s172
        %s174 = sand.u32 %s40, 1
        %s175 = smul.addr %s174, 8
        %s176 = scalar_lea.vmem [#allocation2], %s175
        %p177 = pneg %p53
        %p178 = pneg %p50
        %p179 = pneg %p74
        %p180 = pneg %p71
        %p181 = pneg %p102
        %p182 = pneg %p99
        %s183 = sand.u32 %s89, 1
        %s184 = scalar_lea.sflag [#allocation4], %s183
        %s185 = sand.u32 %s89, 1
        %s186 = smul.addr %s185, 8
        %s187 = scalar_lea.vmem [#allocation7], %s186
        %v188 = vld [vmem:[%s163] sm:$0xff]
        %v189 = vld [vmem:[#allocation5] sm:$0xff]
        %v190 = vld [vmem:[#allocation5 + $0x8] sm:$0xff]
        %v191 = vld [vmem:[#allocation5 + $0x10] sm:$0xff]
        %v192 = vld [vmem:[#allocation5 + $0x18] sm:$0xff]
        %v193 = vld [vmem:[#allocation5 + $0x20] sm:$0xff]
        %v194 = vld [vmem:[#allocation5 + $0x28] sm:$0xff]
        %v195 = vld [vmem:[#allocation5 + $0x30] sm:$0xff]
        %v196 = vld [vmem:[#allocation5 + $0x38] sm:$0xff]
        %v197 = vld [vmem:[#allocation5 + $0x40] sm:$0xff]
        %v198 = vld [vmem:[#allocation5 + $0x48] sm:$0xff]
        %v199 = vld [vmem:[#allocation5 + $0x50] sm:$0xff]
        %v200 = vld [vmem:[#allocation5 + $0x58] sm:$0xff]
        %v201 = vld [vmem:[#allocation5 + $0x60] sm:$0xff]
        %v202 = vld [vmem:[#allocation5 + $0x68] sm:$0xff]
        %v203 = vld [vmem:[#allocation5 + $0x70] sm:$0xff]
        %v204 = vld [vmem:[#allocation5 + $0x78] sm:$0xff]
        %205 = vmatprep.subr.mxu0 0.0
        %206 = vmatpush1.xpose.msra.mxu0 %v189
        %207 = vmatprep.subr.mxu0 0.0
        %208 = vmatpush1.xpose.msra.mxu0 %v190
        %209 = vmatprep.subr.mxu0 0.0
        %210 = vmatpush1.xpose.msra.mxu0 %v191
        %211 = vmatprep.subr.mxu0 0.0
        %212 = vmatpush1.xpose.msra.mxu0 %v192
        %213 = vmatprep.subr.mxu0 0.0
        %214 = vmatpush1.xpose.msra.mxu0 %v193
        %215 = vmatprep.subr.mxu0 0.0
        %216 = vmatpush1.xpose.msra.mxu0 %v194
        %217 = vmatprep.subr.mxu0 0.0
        %218 = vmatpush1.xpose.msra.mxu0 %v195
        %219 = vmatprep.subr.mxu0 0.0
        %220 = vmatpush1.xpose.msra.mxu0 %v196
        %221 = vmatprep.subr.mxu0 0.0
        %222 = vmatpush1.xpose.msra.mxu0 %v197
        %223 = vmatprep.subr.mxu0 0.0
        %224 = vmatpush1.xpose.msra.mxu0 %v198
        %225 = vmatprep.subr.mxu0 0.0
        %226 = vmatpush1.xpose.msra.mxu0 %v199
        %227 = vmatprep.subr.mxu0 0.0
        %228 = vmatpush1.xpose.msra.mxu0 %v200
        %229 = vmatprep.subr.mxu0 0.0
        %230 = vmatpush1.xpose.msra.mxu0 %v201
        %231 = vmatprep.subr.mxu0 0.0
        %232 = vmatpush1.xpose.msra.mxu0 %v202
        %233 = vmatprep.subr.mxu0 0.0
        %234 = vmatpush1.xpose.msra.mxu0 %v203
        %235 = vmatprep.subr.mxu0 0.0
        %236 = vmatpush1.xpose.msra.mxu0 %v204
        %237 = vmatprep.subr.mxu0 0.0
        %238 = vmatpush1.xpose.msra.mxu0 0.0
        %239 = vmatprep.subr.mxu0 0.0
        %240 = vmatpush1.xpose.msra.mxu0 0.0
        %241 = vmatprep.subr.mxu0 0.0
        %242 = vmatpush1.xpose.msra.mxu0 0.0
        %243 = vmatprep.subr.mxu0 0.0
        %244 = vmatpush1.xpose.msra.mxu0 0.0
        %245 = vmatprep.subr.mxu0 0.0
        %246 = vmatpush1.xpose.msra.mxu0 0.0
        %247 = vmatprep.subr.mxu0 0.0
        %248 = vmatpush1.xpose.msra.mxu0 0.0
        %249 = vmatprep.subr.mxu0 0.0
        %250 = vmatpush1.xpose.msra.mxu0 0.0
        %251 = vmatprep.subr.mxu0 0.0
        %252 = vmatpush1.xpose.msra.mxu0 0.0
        %253 = vmatprep.subr.mxu0 0.0
        %254 = vmatpush1.xpose.msra.mxu0 0.0
        %255 = vmatprep.subr.mxu0 0.0
        %256 = vmatpush1.xpose.msra.mxu0 0.0
        %257 = vmatprep.subr.mxu0 0.0
        %258 = vmatpush1.xpose.msra.mxu0 0.0
        %259 = vmatprep.subr.mxu0 0.0
        %260 = vmatpush1.xpose.msra.mxu0 0.0
        %261 = vmatprep.subr.mxu0 0.0
        %262 = vmatpush1.xpose.msra.mxu0 0.0
        %263 = vmatprep.subr.mxu0 0.0
        %264 = vmatpush1.xpose.msra.mxu0 0.0
        %265 = vmatprep.subr.mxu0 0.0
        %266 = vmatpush1.xpose.msra.mxu0 0.0
        %267 = vmatprep.subr.mxu0 0.0
        %268 = vmatpush1.xpose.msra.mxu0 0.0
        %269 = vmatprep.mubr.f32.mxu0 0.0
        %270 = vmatmul.mubr.f32.gmra.mrb[0].mxu0 %v188
        %v271 = vpop.f32.mrb[0].mxu0
        %v272 = vadd.f32 %v188, %v271
        %v273 = vpop.f32.mrb[0].mxu0
        %274 = vdwg.mxu0
        %275 = vst [vmem:[%s187] sm:$0xff] %v272
        %s276 = sand.u32 %s89, 1
        %s277 = scalar_lea.sflag [#allocation4], %s276
        %s278 = sand.u32 %s89, 1
        %s279 = smul.addr %s278, 8
        %s280 = scalar_lea.vmem [#allocation7], %s279
        // Predicated region
        $region37: #{tpu_custom_call.1} parent=27 // pred_check
          %p281 = pneg %p99
        $region38: #{tpu_custom_call.1} parent=27 // pred_check_branch
          %283 = sbr.rel (%p281) target = $region40
        $region39: #{tpu_custom_call.1} parent=27 // pred_region
          %s285 = ssub.s32 128, 128
          %286 = vsyncadd %s277, %s285
          %s287 = sadd.s32 %s25, %s24
          %s288 = smul.addr %s287, 128
          %s289 = scalar_lea.hbm %s2, %s288
          %s291 = sshll.u32 %s280, 4
          %s292 = int_to_ptr.vmem [resolvable:$true] %s291
          %294 = dma.vmem_to_hbm [thread:$0]  %s292, 128, %s289, %s277
        $region40: #{tpu_custom_call.1} parent=27 // pred_fallthru
          _
      $region28: #{tpu_custom_call.1} parent=5 // pred_fallthru
        _
      %p295 = scmp.le.s32.totalorder 2, %s15
      // Predicated region
      $region41: #{tpu_custom_call.1} parent=5 // pred_check
        %p296 = pneg %p295
      $region42: #{tpu_custom_call.1} parent=5 // pred_check_branch
        %298 = sbr.rel (%p296) target = $region44
      $region43: #{tpu_custom_call.1} parent=5 // pred_region
        %s299 = ssub.s32 %s15, 2
        // Predicated region
        $region45: #{tpu_custom_call.1} parent=43 // pred_check
          %p300 = pneg %p105
        $region46: #{tpu_custom_call.1} parent=43 // pred_check_branch
          %302 = sbr.rel (%p300) target = $region48
        $region47: #{tpu_custom_call.1} parent=43 // pred_region
          %s303 = sand.u32 %s90, 1
          %s304 = scalar_lea.sflag [#allocation4], %s303
          %s305 = sand.u32 %s90, 1
          %s306 = smul.addr %s305, 8
          %s307 = scalar_lea.vmem [#allocation7], %s306
          %308 = dma.done %s304, 128
        $region48: #{tpu_custom_call.1} parent=43 // pred_fallthru
          _
      $region44: #{tpu_custom_call.1} parent=5 // pred_fallthru
        _
    $region6: #{tpu_custom_call.1} parent=1 // loop_footer
      %s19 = sadd.s32 1, %s15
    $region7: #{tpu_custom_call.1} parent=1 // loop_footer_branch
      %14 = sbr.rel target = $region3
    $region8: #{tpu_custom_call.1} parent=1 // loop_exit
      _
    %309 = vsyncpa [#allocation3], 1
    %s310 = scalar_lea.sflag [#allocation3], 1
    %311 = vsyncpa %s310, 1
    %312 = vsyncpa [#allocation6], 1
    %313 = vsyncpa [#allocation4], 1
    %s314 = scalar_lea.sflag [#allocation4], 1
    %315 = vsyncpa %s314, 1

</llo_original>
